<compile_context>
chip_gen: v6e
topology: v6e:2x2x1
jax: 0.10.0
libtpu: 0.0.40
codegen_flags: <defaults>
</compile_context>

<pallas_src>
import functools

import jax
import jax.numpy as jnp
from jax.experimental import pallas as pl
from jax.experimental.pallas import tpu as pltpu


def _conv_in_relu_kernel(p_ref, w_ref, o_ref, *, eps):
    # p_ref: (K_pad, HW)   bf16 im2col patches for one batch element
    # w_ref: (CT, K_pad)   bf16 weight tile (CT output channels)
    # o_ref: (CT, HW)      output tile, channels-major / HW lane-dense
    hw = o_ref.shape[1]
    inv_hw = 1.0 / float(hw)

    # Single MXU matmul, f32 accumulation.
    acc = jnp.dot(w_ref[...], p_ref[...],
                  preferred_element_type=jnp.float32)          # (CT, HW) f32

    # InstanceNorm2d (per-sample, per-channel, biased variance, affine=False),
    # fused one-pass statistics: var = E[x^2] - E[x]^2 (f32; HW is small enough
    # that cancellation is a non-issue).  `centered` is never materialized.
    s1 = jnp.sum(acc, axis=1, keepdims=True)                   # (CT, 1)
    s2 = jnp.sum(acc * acc, axis=1, keepdims=True)             # (CT, 1)
    mean = s1 * inv_hw
    var = jnp.maximum(s2 * inv_hw - mean * mean, 0.0)
    inv_std = jax.lax.rsqrt(var + eps)

    # Normalize + ReLU + lane-dense store (single pass over acc).
    y = (acc - mean) * inv_std
    o_ref[...] = jnp.maximum(y, 0.0).astype(o_ref.dtype)


def _pick_cout_tile(cout):
    """Chip-aware Cout tile: 256 for the 256-wide MXUs (v6e/v7x), 128 for v5e."""
    kind = ""
    try:
        kind = jax.devices()[0].device_kind.lower()
    except Exception:  # pragma: no cover - device query is best-effort
        pass
    prefer = 128 if "v5" in kind else 256
    for ct in (prefer, 256, 128, 64, 32, 16, 8):
        if cout % ct == 0:
            return ct
    return cout  # last-resort single tile (fine at small HW)


def conv2d_block(x_nchw, weight, bias=None, *, eps=1e-5):
    """Forward of Conv2DBlock.

    x_nchw : (N, Cin, H, W)       float32
    weight : (Cout, Cin, KH, KW)  PyTorch conv layout
    bias   : (Cout,) or None  -- ignored: a per-channel constant is exactly
             cancelled by the mean subtraction of InstanceNorm(affine=False).
    returns: (N, Cout, H, W)
    """
    del bias  # mathematically cancelled by InstanceNorm (affine=False)

    N, Cin, H, W = x_nchw.shape
    Cout, _, KH, KW = weight.shape
    pad = (KH - 1) // 2            # padding=1 for 3x3, stride=1
    HW = H * W
    K = Cin * KH * KW
    K_pad = ((K + 31) // 32) * 32  # bf16 sublane packing; do NOT pad to 128

    # Wrapper-side glue (XLA): cast to bf16 FIRST, then zero-pad + im2col into
    # a lane-dense operand.  patches[n, c*KH*KW + kh*KW + kw, h*W + w]
    #   = x_pad[n, c, h+kh, w+kw]
    x_bf16 = x_nchw.astype(jnp.bfloat16)
    x_pad = jnp.pad(x_bf16, ((0, 0), (0, 0), (pad, pad), (pad, pad)))
    patches = jnp.stack(
        [x_pad[:, :, kh:kh + H, kw:kw + W] for kh in range(KH) for kw in range(KW)],
        axis=2)                                        # (N, Cin, KH*KW, H, W)
    patches = patches.reshape(N, K, HW)
    w_mat = weight.reshape(Cout, K).astype(jnp.bfloat16)   # K-order matches patches
    if K_pad != K:
        patches = jnp.pad(patches, ((0, 0), (0, K_pad - K), (0, 0)))
        w_mat = jnp.pad(w_mat, ((0, 0), (0, K_pad - K)))

    # Chip-aware Cout tiling; grid (N, Cout/CT) with both axes parallel keeps
    # >=2 megacore-shardable steps whenever N >= 2.
    CT = _pick_cout_tile(Cout)
    grid = (N, Cout // CT)

    out_dtype = x_nchw.dtype     # keep module semantics (f32 output)
    itemsize_out = jnp.dtype(out_dtype).itemsize
    cost = pl.CostEstimate(
        flops=2 * N * HW * Cout * K_pad,
        transcendentals=N * Cout,                       # one rsqrt per (n, channel)
        bytes_accessed=(
            N * K_pad * HW * 2                          # patches: once per n
            + N * Cout * K_pad * 2                      # weights: refetched per n
            + N * Cout * HW * itemsize_out),            # output writeback
    )

    kernel = functools.partial(_conv_in_relu_kernel, eps=eps)

    out_flat = pl.pallas_call(
        kernel,
        out_shape=jax.ShapeDtypeStruct((N, Cout, HW), out_dtype),
        grid_spec=pltpu.PrefetchScalarGridSpec(
            num_scalar_prefetch=0,
            grid=grid,
            in_specs=[
                # im2col patches for batch n (leading dim squeezed away);
                # same block across j, so Pallas keeps it resident.
                pl.BlockSpec((None, K_pad, HW), lambda n, j: (n, 0, 0)),
                # weight tile j of CT output channels.
                pl.BlockSpec((CT, K_pad), lambda n, j: (j, 0)),
            ],
            out_specs=pl.BlockSpec((None, CT, HW), lambda n, j: (n, j, 0)),
        ),
        compiler_params=pltpu.CompilerParams(
            dimension_semantics=("parallel", "parallel")),
        cost_estimate=cost,
    )(patches, w_mat)

    # Free row-major view back to NCHW.
    return out_flat.reshape(N, Cout, H, W)


def _reference(x, weight, bias, eps=1e-5):
    """Pure-JAX reference (bf16 products, f32 accumulation) for validation."""
    conv = jax.lax.conv_general_dilated(
        x.astype(jnp.bfloat16), weight.astype(jnp.bfloat16),
        window_strides=(1, 1), padding=((1, 1), (1, 1)),
        dimension_numbers=("NCHW", "OIHW", "NCHW"),
        preferred_element_type=jnp.float32)
    conv = conv + bias.astype(jnp.float32)[None, :, None, None]
    mean = jnp.mean(conv, axis=(2, 3), keepdims=True)
    var = jnp.mean((conv - mean) ** 2, axis=(2, 3), keepdims=True)
    y = (conv - mean) * jax.lax.rsqrt(var + eps)
    return jnp.maximum(y, 0.0)


if __name__ == "__main__":
    # Module-consistent small shapes: in_channels=3, out_channels=256,
    # kernel 3x3, stride 1, padding 1, batch=2, spatial 16x16.
    N, Cin, H, W = 2, 3, 16, 16
    Cout, KH, KW = 256, 3, 3

    key = jax.random.PRNGKey(0)
    kx, kw, kb = jax.random.split(key, 3)

    x = jax.random.normal(kx, (N, Cin, H, W), dtype=jnp.float32)
    fan_in = Cin * KH * KW
    weight = jax.random.normal(kw, (Cout, Cin, KH, KW), dtype=jnp.float32) / jnp.sqrt(fan_in)
    bias = jax.random.normal(kb, (Cout,), dtype=jnp.float32) * 0.01

    out = conv2d_block(x, weight, bias)
    jax.block_until_ready(out)

    assert out.shape == (N, Cout, H, W), out.shape
    assert bool(jnp.all(out >= 0.0))                 # ReLU
    assert bool(jnp.all(jnp.isfinite(out)))

    ref = _reference(x, weight, bias)
    max_diff = float(jnp.max(jnp.abs(out - ref)))
    assert max_diff < 5e-2, f"max abs diff vs reference: {max_diff}"

    print("KERNEL_OK")
</pallas_src>

<mosaic_0001>
module attributes {stable_mosaic.version = 11 : i64} {
  func.func @_conv_in_relu_kernel(%arg0: i32, %arg1: i32, %arg2: memref<1x32x256xbf16, #tpu.memory_space<vmem>>, %arg3: memref<256x32xbf16, #tpu.memory_space<vmem>>, %arg4: memref<1x256x256xf32, #tpu.memory_space<vmem>>) attributes {dimension_semantics = [#tpu.dimension_semantics<parallel>, #tpu.dimension_semantics<parallel>], iteration_bounds = array<i64: 2, 1>, scalar_prefetch = 0 : i64, scratch_operands = 0 : i64, tpu.core_type = #tpu.core_type<tc>, window_params = [{transform_indices = @transform_0, window_bounds = array<i64: 1, 32, 256>}, {transform_indices = @transform_1, window_bounds = array<i64: 256, 32>}, {transform_indices = @transform_2, window_bounds = array<i64: 1, 256, 256>}]} {
    %c0 = arith.constant 0 : index
    %c0_0 = arith.constant 0 : index
    %0 = vector.load %arg3[%c0, %c0_0] : memref<256x32xbf16, #tpu.memory_space<vmem>>, vector<256x32xbf16>
    %c0_1 = arith.constant 0 : index
    %c0_2 = arith.constant 0 : index
    %c0_3 = arith.constant 0 : index
    %1 = vector.load %arg2[%c0_1, %c0_2, %c0_3] : memref<1x32x256xbf16, #tpu.memory_space<vmem>>, vector<1x32x256xbf16>
    %2 = vector.shape_cast %1 : vector<1x32x256xbf16> to vector<32x256xbf16>
    %cst = arith.constant dense<0.000000e+00> : vector<256x256xf32>
    %3 = tpu.matmul %0, %2, %cst {dimension_numbers = #tpu.dot_dimension_numbers<[1], [0], [0], [1], [0, 0, 1, 1], [], []>} : vector<256x32xbf16>, vector<32x256xbf16>, vector<256x256xf32> -> vector<256x256xf32>
    %cst_4 = arith.constant dense<0.000000e+00> : vector<256xf32>
    %4 = vector.multi_reduction <add>, %3, %cst_4 [1] : vector<256x256xf32> to vector<256xf32>
    %5 = vector.shape_cast %4 : vector<256xf32> to vector<256x1xf32>
    %6 = arith.mulf %3, %3 : vector<256x256xf32>
    %cst_5 = arith.constant dense<0.000000e+00> : vector<256xf32>
    %7 = vector.multi_reduction <add>, %6, %cst_5 [1] : vector<256x256xf32> to vector<256xf32>
    %8 = vector.shape_cast %7 : vector<256xf32> to vector<256x1xf32>
    %cst_6 = arith.constant 3.906250e-03 : f32
    %9 = vector.broadcast %cst_6 : f32 to vector<256x1xf32>
    %10 = arith.mulf %5, %9 : vector<256x1xf32>
    %cst_7 = arith.constant 3.906250e-03 : f32
    %11 = vector.broadcast %cst_7 : f32 to vector<256x1xf32>
    %12 = arith.mulf %8, %11 : vector<256x1xf32>
    %13 = arith.mulf %10, %10 : vector<256x1xf32>
    %14 = arith.subf %12, %13 : vector<256x1xf32>
    %cst_8 = arith.constant 0.000000e+00 : f32
    %15 = vector.broadcast %cst_8 : f32 to vector<256x1xf32>
    %16 = arith.maximumf %14, %15 : vector<256x1xf32>
    %cst_9 = arith.constant 9.99999974E-6 : f32
    %17 = vector.broadcast %cst_9 : f32 to vector<256x1xf32>
    %18 = arith.addf %16, %17 : vector<256x1xf32>
    %19 = math.rsqrt %18 : vector<256x1xf32>
    %20 = vector.broadcast %10 : vector<256x1xf32> to vector<256x256xf32>
    %21 = arith.subf %3, %20 : vector<256x256xf32>
    %22 = vector.broadcast %19 : vector<256x1xf32> to vector<256x256xf32>
    %23 = arith.mulf %21, %22 : vector<256x256xf32>
    %cst_10 = arith.constant 0.000000e+00 : f32
    %24 = vector.broadcast %cst_10 : f32 to vector<256x256xf32>
    %25 = arith.maximumf %23, %24 : vector<256x256xf32>
    %c0_11 = arith.constant 0 : index
    %c0_12 = arith.constant 0 : index
    %c0_13 = arith.constant 0 : index
    %26 = vector.load %arg4[%c0_11, %c0_12, %c0_13] : memref<1x256x256xf32, #tpu.memory_space<vmem>>, vector<1x256x256xf32>
    %27 = vector.shape_cast %26 : vector<1x256x256xf32> to vector<256x256xf32>
    %28 = vector.shape_cast %25 : vector<256x256xf32> to vector<1x256x256xf32>
    tpu.vector_store %arg4[%c0_11, %c0_12, %c0_13], %28 {strides = array<i32>} : memref<1x256x256xf32, #tpu.memory_space<vmem>>, vector<1x256x256xf32>,
    return
  }
  func.func @transform_0(%arg0: i32, %arg1: i32) -> (i32, i32, i32) {
    %c0_i32 = arith.constant 0 : i32
    %c0_i32_0 = arith.constant 0 : i32
    %c0_i32_1 = arith.constant 0 : i32
    return %arg0, %c0_i32, %c0_i32_0 : i32, i32, i32
  }
  func.func @transform_1(%arg0: i32, %arg1: i32) -> (i32, i32) {
    %c0_i32 = arith.constant 0 : i32
    %c0_i32_0 = arith.constant 0 : i32
    return %arg1, %c0_i32 : i32, i32
  }
  func.func @transform_2(%arg0: i32, %arg1: i32) -> (i32, i32, i32) {
    %c0_i32 = arith.constant 0 : i32
    %c0_i32_0 = arith.constant 0 : i32
    return %arg0, %arg1, %c0_i32 : i32, i32, i32
  }
}

</mosaic_0001>

<llo_original>
// kernel: tpu_custom_call.1
$region0: #{tpu_custom_call.1}
  #allocation0 [shape = 'u32[]', space=smem, size = 0x4, offset = 0x4, fixed_abs, tag = 'smem constant byte address 0x4 - core index']
  #allocation1 [shape = 'u32[144,128]{1,0:T(1,128)}', space=vmem, size = 0x12000, scoped, tag = 'internal scratch']
  %s0 = inlined_call_operand.vmem [shape: bf16[2,32,256], index: 0, kind: input, shape index: {}]
  %s1 = inlined_call_operand.vmem [shape: bf16[256,32], index: 1, kind: input, shape index: {}]
  %s2 = inlined_call_operand.hbm [shape: f32[2,256,256], index: 2, kind: output, shape index: {}]
  %s3 = sld [smem:[#allocation0]]
  $region41: #{tpu_custom_call.1} parent=0
    _
  %s5 = ssub.s32 1, %s3
  %s6 = scalar_select 0, %s5, %s3
  $region1: #{tpu_custom_call.1} parent=0
    #allocation2 [shape = 'u8[524288]{0}', space=vmem, size = 0x80000, scoped, tag = 'output window, operand 0']
    #allocation3 [shape = 's32[2]{0}', space=sflag, size = 0x8, scoped, tag = 'scoped memory for tpu_custom_call.1']
    %7 = vsyncpa [#allocation3], 0
    %s8 = scalar_lea.sflag [#allocation3], 1
    %9 = vsyncpa %s8, 0
    loop: start=0, step=1, limit=4
    $region2: #{tpu_custom_call.1} parent=1 // loop_pre_header
      _
    $region3: #{tpu_custom_call.1} parent=1 // loop_header
      %s11 = sphi 0, %s15
      %p12 = scmp.ge.s32.totalorder %s11, 4
      %s18 = sphi 0, %s30
      %s19 = sphi 0, %s26
      %s20 = sphi 0, %s18
      %s21 = sphi 0, %s19
      %s22 = sphi 0, %s20
      %s23 = sphi 0, %s21
      %s33 = sphi 0, %s35
      %s36 = sphi 0, %s33
      %s37 = sphi 0, %s36
      %s53 = sphi 0, %s37
      %s59 = sphi 0, %s61
      %s62 = sphi 0, %s59
      %s63 = sphi 0, %s62
      %s79 = sphi 0, %s63
      %s87 = sphi 0, %s89
      %s90 = sphi 0, %s87
      %s91 = sphi 0, %s90
      %s107 = sphi 0, %s91
    $region4: #{tpu_custom_call.1} parent=1 // loop_header_branch
      %14 = sbr.rel (%p12) target = $region8
    $region5: #{tpu_custom_call.1} parent=1 // loop_body
      %s16 = ssub.s32 %s11, 1
      %s17 = ssub.s32 %s11, 2
      %s24 = sadd.s32 1, %s19
      %p25 = scmp.ge.s32.totalorder %s24, 1
      %s26 = scalar_select %p25, 0, %s24
      %s27 = sadd.s32 1, %s18
      %s28 = scalar_select %p25, %s27, %s18
      %p29 = scmp.ge.s32.totalorder %s28, 2
      %s30 = scalar_select %p29, 0, %s28
      %s31 = ssub.s32 %s18, %s30
      %p32 = scmp.eq.s32.totalorder %s31, 0
      %s34 = sadd.s32 %s33, 1
      %s35 = scalar_select %p32, %s33, %s34
      %p38 = pneg %p32
      %p39 = scmp.eq.s32.totalorder %s11, 1
      %p40 = por %p38, %p39
      %p41 = scmp.ne.s32.totalorder %s33, %s36
      %p42 = scmp.eq.s32.totalorder %s11, 0
      %p43 = por %p41, %p42
      %p44 = scmp.ne.s32.totalorder %s33, %s36
      %p45 = scmp.eq.s32.totalorder %s16, 1
      %p46 = por %p44, %p45
      %p47 = scmp.ne.s32.totalorder %s36, %s37
      %p48 = scmp.eq.s32.totalorder %s16, 0
      %p49 = por %p47, %p48
      %p50 = scmp.ne.s32.totalorder %s36, %s37
      %p51 = scmp.eq.s32.totalorder %s17, 1
      %p52 = por %p50, %p51
      %p54 = scmp.ne.s32.totalorder %s37, %s53
      %p55 = scmp.eq.s32.totalorder %s17, 0
      %p56 = por %p54, %p55
      %s57 = ssub.s32 %s19, %s26
      %p58 = scmp.eq.s32.totalorder %s57, 0
      %s60 = sadd.s32 %s59, 1
      %s61 = scalar_select %p58, %s59, %s60
      %p64 = pneg %p58
      %p65 = scmp.eq.s32.totalorder %s11, 1
      %p66 = por %p64, %p65
      %p67 = scmp.ne.s32.totalorder %s59, %s62
      %p68 = scmp.eq.s32.totalorder %s11, 0
      %p69 = por %p67, %p68
      %p70 = scmp.ne.s32.totalorder %s59, %s62
      %p71 = scmp.eq.s32.totalorder %s16, 1
      %p72 = por %p70, %p71
      %p73 = scmp.ne.s32.totalorder %s62, %s63
      %p74 = scmp.eq.s32.totalorder %s16, 0
      %p75 = por %p73, %p74
      %p76 = scmp.ne.s32.totalorder %s62, %s63
      %p77 = scmp.eq.s32.totalorder %s17, 1
      %p78 = por %p76, %p77
      %p80 = scmp.ne.s32.totalorder %s63, %s79
      %p81 = scmp.eq.s32.totalorder %s17, 0
      %p82 = por %p80, %p81
      %s83 = ssub.s32 %s18, %s30
      %s84 = ssub.s32 %s19, %s26
      %s85 = sor.u32 %s83, %s84
      %p86 = scmp.eq.s32.totalorder %s85, 0
      %s88 = sadd.s32 %s87, 1
      %s89 = scalar_select %p86, %s87, %s88
      %p92 = pneg %p86
      %p93 = scmp.eq.s32.totalorder %s11, 1
      %p94 = por %p92, %p93
      %p95 = scmp.ne.s32.totalorder %s87, %s90
      %p96 = scmp.eq.s32.totalorder %s11, 0
      %p97 = por %p95, %p96
      %p98 = scmp.ne.s32.totalorder %s87, %s90
      %p99 = scmp.eq.s32.totalorder %s16, 1
      %p100 = por %p98, %p99
      %p101 = scmp.ne.s32.totalorder %s90, %s91
      %p102 = scmp.eq.s32.totalorder %s16, 0
      %p103 = por %p101, %p102
      %p104 = scmp.ne.s32.totalorder %s90, %s91
      %p105 = scmp.eq.s32.totalorder %s17, 1
      %p106 = por %p104, %p105
      %p108 = scmp.ne.s32.totalorder %s91, %s107
      %p109 = scmp.eq.s32.totalorder %s17, 0
      %p110 = por %p108, %p109
      %p111 = scmp.le.s32.totalorder 1, %s11
      %p112 = scmp.lt.s32.totalorder %s11, 3
      %p113 = pnand %p111, %p112
      %p114 = pneg %p113
      // Predicated region
      $region9: #{tpu_custom_call.1} parent=5 // pred_check
        _
      $region10: #{tpu_custom_call.1} parent=5 // pred_check_branch
        %116 = sbr.rel (%p113) target = $region12
      $region11: #{tpu_custom_call.1} parent=5 // pred_region
        %s117 = ssub.s32 %s11, 1
        // Predicated region
        $region13: #{tpu_custom_call.1} parent=11 // pred_check
          %p118 = pneg %p75
        $region14: #{tpu_custom_call.1} parent=11 // pred_check_branch
          %120 = sbr.rel (%p118) target = $region16
        $region15: #{tpu_custom_call.1} parent=11 // pred_region
          %s121 = smul.u32 32, %s21
          %p122 = scmp.lt.s32.totalorder %s121, 31
          %s123 = scalar_select %p122, %s121, 31
          %s124 = smul.addr %s123, 4
          %s125 = scalar_lea.vmem %s1, %s124
          %s126 = smul.u32 32, %s21
        $region16: #{tpu_custom_call.1} parent=11 // pred_fallthru
          _
      $region12: #{tpu_custom_call.1} parent=5 // pred_fallthru
        _
      %p127 = scmp.lt.s32.totalorder %s11, 2
      // Predicated region
      $region17: #{tpu_custom_call.1} parent=5 // pred_check
        %p128 = pneg %p127
      $region18: #{tpu_custom_call.1} parent=5 // pred_check_branch
        %130 = sbr.rel (%p128) target = $region20
      $region19: #{tpu_custom_call.1} parent=5 // pred_region
        // Predicated region
        $region21: #{tpu_custom_call.1} parent=19 // pred_check
          %p131 = pneg %p43
        $region22: #{tpu_custom_call.1} parent=19 // pred_check_branch
          %133 = sbr.rel (%p131) target = $region24
        $region23: #{tpu_custom_call.1} parent=19 // pred_region
          %p134 = scmp.lt.s32.totalorder %s18, 1
          %s135 = scalar_select %p134, %s18, 1
          %s136 = smul.addr %s135, 8
          %s137 = smul.addr %s136, 4
          %s138 = scalar_lea.vmem %s0, %s137
        $region24: #{tpu_custom_call.1} parent=19 // pred_fallthru
          _
      $region20: #{tpu_custom_call.1} parent=5 // pred_fallthru
        _
      %p139 = scmp.le.s32.totalorder 1, %s11
      %p140 = scmp.lt.s32.totalorder %s11, 3
      %p141 = pnand %p139, %p140
      %p142 = pneg %p141
      // Predicated region
      $region25: #{tpu_custom_call.1} parent=5 // pred_check
        _
      $region26: #{tpu_custom_call.1} parent=5 // pred_check_branch
        %144 = sbr.rel (%p141) target = $region28
      $region27: #{tpu_custom_call.1} parent=5 // pred_region
        %s145 = ssub.s32 %s11, 1
        %p146 = scmp.lt.s32.totalorder %s20, 1
        %s147 = scalar_select %p146, %s20, 1
        %s148 = smul.addr %s147, 8
        %s149 = smul.addr %s148, 4
        %s150 = scalar_lea.vmem %s0, %s149
        %p151 = pneg %p49
        %p152 = pneg %p46
        %s153 = smul.u32 32, %s21
        %p154 = scmp.lt.s32.totalorder %s153, 31
        %s155 = scalar_select %p154, %s153, 31
        %s156 = smul.addr %s155, 4
        %s157 = scalar_lea.vmem %s1, %s156
        %p158 = pneg %p75
        %p159 = pneg %p72
        %p160 = pneg %p103
        %p161 = pneg %p100
        %s162 = sand.u32 %s90, 1
        %s163 = scalar_lea.sflag [#allocation3], %s162
        %s164 = sand.u32 %s90, 1
        %s165 = smul.addr %s164, 512
        %s166 = scalar_lea.vmem [#allocation2], %s165
        %p167 = scmp.lt.s32.totalorder %s20, 1
        %s168 = scalar_select %p167, %s20, 1
        %s169 = smul.addr %s168, 8
        %s170 = smul.addr %s169, 4
        %s171 = scalar_lea.vmem %s0, %s170
        %s172 = smul.u32 32, %s21
        %p173 = scmp.lt.s32.totalorder %s172, 31
        %s174 = scalar_select %p173, %s172, 31
        %s175 = smul.addr %s174, 4
        %s176 = scalar_lea.vmem %s1, %s175
        %s177 = smul.u32 32, %s21
        %s178 = smul.u32 32, %s21
        %v180 = vld [vmem:[%s176] sm:$0xf]
        %v181 = vld [vmem:[%s176 + $0x4] sm:$0xf]
        %v182 = vld [vmem:[%s176 + $0x8] sm:$0xf]
        %v183 = vld [vmem:[%s176 + $0xc] sm:$0xf]
        %v184 = vld [vmem:[%s176 + $0x10] sm:$0xf]
        %v185 = vld [vmem:[%s176 + $0x14] sm:$0xf]
        %v186 = vld [vmem:[%s176 + $0x18] sm:$0xf]
        %v187 = vld [vmem:[%s176 + $0x1c] sm:$0xf]
        %v188 = vld [vmem:[%s176 + $0x20] sm:$0xf]
        %v189 = vld [vmem:[%s176 + $0x24] sm:$0xf]
        %v190 = vld [vmem:[%s176 + $0x28] sm:$0xf]
        %v191 = vld [vmem:[%s176 + $0x2c] sm:$0xf]
        %v192 = vld [vmem:[%s176 + $0x30] sm:$0xf]
        %v193 = vld [vmem:[%s176 + $0x34] sm:$0xf]
        %v194 = vld [vmem:[%s176 + $0x38] sm:$0xf]
        %v195 = vld [vmem:[%s176 + $0x3c] sm:$0xf]
        %v196 = vld [vmem:[%s176 + $0x40] sm:$0xf]
        %v197 = vld [vmem:[%s176 + $0x44] sm:$0xf]
        %v198 = vld [vmem:[%s176 + $0x48] sm:$0xf]
        %v199 = vld [vmem:[%s176 + $0x4c] sm:$0xf]
        %v200 = vld [vmem:[%s176 + $0x50] sm:$0xf]
        %v201 = vld [vmem:[%s176 + $0x54] sm:$0xf]
        %v202 = vld [vmem:[%s176 + $0x58] sm:$0xf]
        %v203 = vld [vmem:[%s176 + $0x5c] sm:$0xf]
        %v204 = vld [vmem:[%s176 + $0x60] sm:$0xf]
        %v205 = vld [vmem:[%s176 + $0x64] sm:$0xf]
        %v206 = vld [vmem:[%s176 + $0x68] sm:$0xf]
        %v207 = vld [vmem:[%s176 + $0x6c] sm:$0xf]
        %v208 = vld [vmem:[%s176 + $0x70] sm:$0xf]
        %v209 = vld [vmem:[%s176 + $0x74] sm:$0xf]
        %v210 = vld [vmem:[%s176 + $0x78] sm:$0xf]
        %v211 = vld [vmem:[%s176 + $0x7c] sm:$0xf]
        %v212 = vld [vmem:[%s171] sm:$0xff]
        %v213 = vld [vmem:[%s171 + $0x8] sm:$0xff]
        %v214 = vld [vmem:[%s171 + $0x10] sm:$0xff]
        %v215 = vld [vmem:[%s171 + $0x18] sm:$0xff]
        %v248 = vunpack.c.l.b16 %v180
        %v249 = vunpack.c.l.b16 %v181
        %v250 = vunpack.c.l.b16 %v182
        %v251 = vunpack.c.l.b16 %v183
        %v252 = vunpack.c.l.b16 %v184
        %v253 = vunpack.c.l.b16 %v185
        %v254 = vunpack.c.l.b16 %v186
        %v255 = vunpack.c.l.b16 %v187
        %v256 = vunpack.c.l.b16 %v188
        %v257 = vunpack.c.l.b16 %v189
        %v258 = vunpack.c.l.b16 %v190
        %v259 = vunpack.c.l.b16 %v191
        %v260 = vunpack.c.l.b16 %v192
        %v261 = vunpack.c.l.b16 %v193
        %v262 = vunpack.c.l.b16 %v194
        %v263 = vunpack.c.l.b16 %v195
        %v264 = vunpack.c.l.b16 %v196
        %v265 = vunpack.c.l.b16 %v197
        %v266 = vunpack.c.l.b16 %v198
        %v267 = vunpack.c.l.b16 %v199
        %v268 = vunpack.c.l.b16 %v200
        %v269 = vunpack.c.l.b16 %v201
        %v270 = vunpack.c.l.b16 %v202
        %v271 = vunpack.c.l.b16 %v203
        %v272 = vunpack.c.l.b16 %v204
        %v273 = vunpack.c.l.b16 %v205
        %v274 = vunpack.c.l.b16 %v206
        %v275 = vunpack.c.l.b16 %v207
        %v276 = vunpack.c.l.b16 %v208
        %v277 = vunpack.c.l.b16 %v209
        %v278 = vunpack.c.l.b16 %v210
        %v279 = vunpack.c.l.b16 %v211
        %v280 = vpack.c.b16 %v249, %v248
        %v281 = vpack.c.b16 %v251, %v250
        %v282 = vpack.c.b16 %v253, %v252
        %v283 = vpack.c.b16 %v255, %v254
        %v284 = vpack.c.b16 %v257, %v256
        %v285 = vpack.c.b16 %v259, %v258
        %v286 = vpack.c.b16 %v261, %v260
        %v287 = vpack.c.b16 %v263, %v262
        %v288 = vpack.c.b16 %v265, %v264
        %v289 = vpack.c.b16 %v267, %v266
        %v290 = vpack.c.b16 %v269, %v268
        %v291 = vpack.c.b16 %v271, %v270
        %v292 = vpack.c.b16 %v273, %v272
        %v293 = vpack.c.b16 %v275, %v274
        %v294 = vpack.c.b16 %v277, %v276
        %v295 = vpack.c.b16 %v279, %v278
        %v300 = vunpack.c.l.b16 %v212
        %v301 = vunpack.c.h.b16 %v212
        %v302 = vunpack.c.l.b16 %v213
        %v303 = vunpack.c.h.b16 %v213
        %v304 = vunpack.c.l.b16 %v214
        %v305 = vunpack.c.h.b16 %v214
        %v306 = vunpack.c.l.b16 %v215
        %v307 = vunpack.c.h.b16 %v215
        %v308 = vpack.c.b16 %v302, %v300
        %v309 = vpack.c.b16 %v303, %v301
        %v310 = vpack.c.b16 %v306, %v304
        %v311 = vpack.c.b16 %v307, %v305
        %vm316 = vcmask 261120
        %v318 = vsel %vm316, %v280, 0
        %v321 = vsel %vm316, %v281, 0
        %v324 = vsel %vm316, %v282, 0
        %v327 = vsel %vm316, %v283, 0
        %v330 = vsel %vm316, %v284, 0
        %v333 = vsel %vm316, %v285, 0
        %v336 = vsel %vm316, %v286, 0
        %v339 = vsel %vm316, %v287, 0
        %v342 = vsel %vm316, %v288, 0
        %v345 = vsel %vm316, %v289, 0
        %v348 = vsel %vm316, %v290, 0
        %v351 = vsel %vm316, %v291, 0
        %v354 = vsel %vm316, %v292, 0
        %v357 = vsel %vm316, %v293, 0
        %v360 = vsel %vm316, %v294, 0
        %v363 = vsel %vm316, %v295, 0
        %365 = vmatprep.subr.bf16.mxu0 0
        %366 = vmatpush1.bf16.msra.mxu0 0
        %367 = vmatprep.subr.bf16.mxu0 0
        %368 = vmatpush1.bf16.msra.mxu0 0
        %369 = vmatprep.subr.bf16.mxu0 0
        %370 = vmatpush1.bf16.msra.mxu0 0
        %371 = vmatprep.subr.bf16.mxu0 0
        %372 = vmatpush1.bf16.msra.mxu0 0
        %373 = vmatprep.subr.bf16.mxu0 0
        %374 = vmatpush1.bf16.msra.mxu0 0
        %375 = vmatprep.subr.bf16.mxu0 0
        %376 = vmatpush1.bf16.msra.mxu0 0
        %377 = vmatprep.subr.bf16.mxu0 %v311
        %378 = vmatpush1.bf16.msra.mxu0 %v310
        %379 = vmatprep.subr.bf16.mxu0 %v309
        %380 = vmatpush1.bf16.msra.mxu0 %v308
        %381 = vmatprep.subr.bf16.mxu0 0
        %382 = vmatpush2.bf16.msra.mxu0 0
        %383 = vmatprep.subr.bf16.mxu0 0
        %384 = vmatpush2.bf16.msra.mxu0 0
        %385 = vmatprep.subr.bf16.mxu0 0
        %386 = vmatpush2.bf16.msra.mxu0 0
        %387 = vmatprep.subr.bf16.mxu0 0
        %388 = vmatpush2.bf16.msra.mxu0 0
        %389 = vmatprep.subr.bf16.mxu0 0
        %390 = vmatpush2.bf16.msra.mxu0 0
        %391 = vmatprep.subr.bf16.mxu0 0
        %392 = vmatpush2.bf16.msra.mxu0 0
        %393 = vmatprep.subr.bf16.mxu0 0
        %394 = vmatpush2.bf16.msra.mxu0 0
        %395 = vmatprep.subr.bf16.mxu0 0
        %396 = vmatpush2.bf16.msra.mxu0 0
        %397 = vmatprep.mubr.bf16.mxu0 0
        %398 = vmatmul.mubr.bf16.gmra.mxu0 %v318
        %v399 = vpop.f32.mrf.mxu0
        %v400 = vadd.f32 0.0, %v399
        %v401 = vpop.f32.mrf.mxu0
        %v402 = vadd.f32 0.0, %v401
        %v403 = vpop.f32.mrf.mxu0
        %v404 = vadd.f32 0.0, %v403
        %v405 = vpop.f32.mrf.mxu0
        %v406 = vadd.f32 0.0, %v405
        %407 = vmatprep.mubr.bf16.mxu0 0
        %408 = vmatmul.mubr.bf16.gmra.mxu0 %v321
        %v409 = vpop.f32.mrf.mxu0
        %v410 = vadd.f32 0.0, %v409
        %v411 = vpop.f32.mrf.mxu0
        %v412 = vadd.f32 0.0, %v411
        %v413 = vpop.f32.mrf.mxu0
        %v414 = vadd.f32 0.0, %v413
        %v415 = vpop.f32.mrf.mxu0
        %v416 = vadd.f32 0.0, %v415
        %417 = vmatprep.mubr.bf16.mxu0 0
        %418 = vmatmul.mubr.bf16.gmra.mxu0 %v324
        %v419 = vpop.f32.mrf.mxu0
        %v420 = vadd.f32 0.0, %v419
        %v421 = vpop.f32.mrf.mxu0
        %v422 = vadd.f32 0.0, %v421
        %v423 = vpop.f32.mrf.mxu0
        %v424 = vadd.f32 0.0, %v423
        %v425 = vpop.f32.mrf.mxu0
        %v426 = vadd.f32 0.0, %v425
        %427 = vmatprep.mubr.bf16.mxu0 0
        %428 = vmatmul.mubr.bf16.gmra.mxu0 %v327
        %v429 = vpop.f32.mrf.mxu0
        %v430 = vadd.f32 0.0, %v429
        %v431 = vpop.f32.mrf.mxu0
        %v432 = vadd.f32 0.0, %v431
        %v433 = vpop.f32.mrf.mxu0
        %v434 = vadd.f32 0.0, %v433
        %v435 = vpop.f32.mrf.mxu0
        %v436 = vadd.f32 0.0, %v435
        %437 = vmatprep.mubr.bf16.mxu0 0
        %438 = vmatmul.mubr.bf16.gmra.mxu0 %v330
        %v439 = vpop.f32.mrf.mxu0
        %v440 = vadd.f32 0.0, %v439
        %v441 = vpop.f32.mrf.mxu0
        %v442 = vadd.f32 0.0, %v441
        %v443 = vpop.f32.mrf.mxu0
        %v444 = vadd.f32 0.0, %v443
        %v445 = vpop.f32.mrf.mxu0
        %v446 = vadd.f32 0.0, %v445
        %447 = vmatprep.mubr.bf16.mxu0 0
        %448 = vmatmul.mubr.bf16.gmra.mxu0 %v333
        %v449 = vpop.f32.mrf.mxu0
        %v450 = vadd.f32 0.0, %v449
        %v451 = vpop.f32.mrf.mxu0
        %v452 = vadd.f32 0.0, %v451
        %v453 = vpop.f32.mrf.mxu0
        %v454 = vadd.f32 0.0, %v453
        %v455 = vpop.f32.mrf.mxu0
        %v456 = vadd.f32 0.0, %v455
        %457 = vmatprep.mubr.bf16.mxu0 0
        %458 = vmatmul.mubr.bf16.gmra.mxu0 %v336
        %v459 = vpop.f32.mrf.mxu0
        %v460 = vadd.f32 0.0, %v459
        %v461 = vpop.f32.mrf.mxu0
        %v462 = vadd.f32 0.0, %v461
        %v463 = vpop.f32.mrf.mxu0
        %v464 = vadd.f32 0.0, %v463
        %v465 = vpop.f32.mrf.mxu0
        %v466 = vadd.f32 0.0, %v465
        %467 = vmatprep.mubr.bf16.mxu0 0
        %468 = vmatmul.mubr.bf16.gmra.mxu0 %v339
        %v469 = vpop.f32.mrf.mxu0
        %v470 = vadd.f32 0.0, %v469
        %v471 = vpop.f32.mrf.mxu0
        %v472 = vadd.f32 0.0, %v471
        %v473 = vpop.f32.mrf.mxu0
        %v474 = vadd.f32 0.0, %v473
        %v475 = vpop.f32.mrf.mxu0
        %v476 = vadd.f32 0.0, %v475
        %477 = vmatprep.mubr.bf16.mxu0 0
        %478 = vmatmul.mubr.bf16.gmra.mxu0 %v342
        %v479 = vpop.f32.mrf.mxu0
        %v480 = vadd.f32 0.0, %v479
        %v481 = vpop.f32.mrf.mxu0
        %v482 = vadd.f32 0.0, %v481
        %v483 = vpop.f32.mrf.mxu0
        %v484 = vadd.f32 0.0, %v483
        %v485 = vpop.f32.mrf.mxu0
        %v486 = vadd.f32 0.0, %v485
        %487 = vmatprep.mubr.bf16.mxu0 0
        %488 = vmatmul.mubr.bf16.gmra.mxu0 %v345
        %v489 = vpop.f32.mrf.mxu0
        %v490 = vadd.f32 0.0, %v489
        %v491 = vpop.f32.mrf.mxu0
        %v492 = vadd.f32 0.0, %v491
        %v493 = vpop.f32.mrf.mxu0
        %v494 = vadd.f32 0.0, %v493
        %v495 = vpop.f32.mrf.mxu0
        %v496 = vadd.f32 0.0, %v495
        %497 = vmatprep.mubr.bf16.mxu0 0
        %498 = vmatmul.mubr.bf16.gmra.mxu0 %v348
        %v499 = vpop.f32.mrf.mxu0
        %v500 = vadd.f32 0.0, %v499
        %v501 = vpop.f32.mrf.mxu0
        %v502 = vadd.f32 0.0, %v501
        %v503 = vpop.f32.mrf.mxu0
        %v504 = vadd.f32 0.0, %v503
        %v505 = vpop.f32.mrf.mxu0
        %v506 = vadd.f32 0.0, %v505
        %507 = vmatprep.mubr.bf16.mxu0 0
        %508 = vmatmul.mubr.bf16.gmra.mxu0 %v351
        %v509 = vpop.f32.mrf.mxu0
        %v510 = vadd.f32 0.0, %v509
        %v511 = vpop.f32.mrf.mxu0
        %v512 = vadd.f32 0.0, %v511
        %v513 = vpop.f32.mrf.mxu0
        %v514 = vadd.f32 0.0, %v513
        %v515 = vpop.f32.mrf.mxu0
        %v516 = vadd.f32 0.0, %v515
        %517 = vmatprep.mubr.bf16.mxu0 0
        %518 = vmatmul.mubr.bf16.gmra.mxu0 %v354
        %v519 = vpop.f32.mrf.mxu0
        %v520 = vadd.f32 0.0, %v519
        %v521 = vpop.f32.mrf.mxu0
        %v522 = vadd.f32 0.0, %v521
        %v523 = vpop.f32.mrf.mxu0
        %v524 = vadd.f32 0.0, %v523
        %v525 = vpop.f32.mrf.mxu0
        %v526 = vadd.f32 0.0, %v525
        %527 = vmatprep.mubr.bf16.mxu0 0
        %528 = vmatmul.mubr.bf16.gmra.mxu0 %v357
        %v529 = vpop.f32.mrf.mxu0
        %v530 = vadd.f32 0.0, %v529
        %v531 = vpop.f32.mrf.mxu0
        %v532 = vadd.f32 0.0, %v531
        %v533 = vpop.f32.mrf.mxu0
        %v534 = vadd.f32 0.0, %v533
        %v535 = vpop.f32.mrf.mxu0
        %v536 = vadd.f32 0.0, %v535
        %537 = vmatprep.mubr.bf16.mxu0 0
        %538 = vmatmul.mubr.bf16.gmra.mxu0 %v360
        %v539 = vpop.f32.mrf.mxu0
        %v540 = vadd.f32 0.0, %v539
        %v541 = vpop.f32.mrf.mxu0
        %v542 = vadd.f32 0.0, %v541
        %v543 = vpop.f32.mrf.mxu0
        %v544 = vadd.f32 0.0, %v543
        %v545 = vpop.f32.mrf.mxu0
        %v546 = vadd.f32 0.0, %v545
        %547 = vmatprep.mubr.bf16.mxu0 0
        %548 = vmatmul.mubr.bf16.gmra.mxu0 %v363
        %v549 = vpop.f32.mrf.mxu0
        %v550 = vadd.f32 0.0, %v549
        %v551 = vpop.f32.mrf.mxu0
        %v552 = vadd.f32 0.0, %v551
        %v553 = vpop.f32.mrf.mxu0
        %v554 = vadd.f32 0.0, %v553
        %v555 = vpop.f32.mrf.mxu0
        %v556 = vadd.f32 0.0, %v555
        %557 = vdwg.mxu0
        %v558 = vadd.f32 %v400, %v402
        %559 = vadd.xlane.f32.xlu0 %v558
        %v560 = vpop.xlane.xlu0 %559
        %v561 = vadd.f32 %v404, %v406
        %562 = vadd.xlane.f32.xlu0 %v561
        %v563 = vpop.xlane.xlu0 %562
        %v564 = vadd.f32 %v410, %v412
        %565 = vadd.xlane.f32.xlu0 %v564
        %v566 = vpop.xlane.xlu0 %565
        %v567 = vadd.f32 %v414, %v416
        %568 = vadd.xlane.f32.xlu0 %v567
        %v569 = vpop.xlane.xlu0 %568
        %v570 = vadd.f32 %v420, %v422
        %571 = vadd.xlane.f32.xlu0 %v570
        %v572 = vpop.xlane.xlu0 %571
        %v573 = vadd.f32 %v424, %v426
        %574 = vadd.xlane.f32.xlu0 %v573
        %v575 = vpop.xlane.xlu0 %574
        %v576 = vadd.f32 %v430, %v432
        %577 = vadd.xlane.f32.xlu0 %v576
        %v578 = vpop.xlane.xlu0 %577
        %v579 = vadd.f32 %v434, %v436
        %580 = vadd.xlane.f32.xlu0 %v579
        %v581 = vpop.xlane.xlu0 %580
        %v582 = vadd.f32 %v440, %v442
        %583 = vadd.xlane.f32.xlu0 %v582
        %v584 = vpop.xlane.xlu0 %583
        %v585 = vadd.f32 %v444, %v446
        %586 = vadd.xlane.f32.xlu0 %v585
        %v587 = vpop.xlane.xlu0 %586
        %v588 = vadd.f32 %v450, %v452
        %589 = vadd.xlane.f32.xlu0 %v588
        %v590 = vpop.xlane.xlu0 %589
        %v591 = vadd.f32 %v454, %v456
        %592 = vadd.xlane.f32.xlu0 %v591
        %v593 = vpop.xlane.xlu0 %592
        %v594 = vadd.f32 %v460, %v462
        %595 = vadd.xlane.f32.xlu0 %v594
        %v596 = vpop.xlane.xlu0 %595
        %v597 = vadd.f32 %v464, %v466
        %598 = vadd.xlane.f32.xlu0 %v597
        %v599 = vpop.xlane.xlu0 %598
        %v600 = vadd.f32 %v470, %v472
        %601 = vadd.xlane.f32.xlu0 %v600
        %v602 = vpop.xlane.xlu0 %601
        %v603 = vadd.f32 %v474, %v476
        %604 = vadd.xlane.f32.xlu0 %v603
        %v605 = vpop.xlane.xlu0 %604
        %v606 = vadd.f32 %v480, %v482
        %607 = vadd.xlane.f32.xlu0 %v606
        %v608 = vpop.xlane.xlu0 %607
        %v609 = vadd.f32 %v484, %v486
        %610 = vadd.xlane.f32.xlu0 %v609
        %v611 = vpop.xlane.xlu0 %610
        %v612 = vadd.f32 %v490, %v492
        %613 = vadd.xlane.f32.xlu0 %v612
        %v614 = vpop.xlane.xlu0 %613
        %v615 = vadd.f32 %v494, %v496
        %616 = vadd.xlane.f32.xlu0 %v615
        %v617 = vpop.xlane.xlu0 %616
        %v618 = vadd.f32 %v500, %v502
        %619 = vadd.xlane.f32.xlu0 %v618
        %v620 = vpop.xlane.xlu0 %619
        %v621 = vadd.f32 %v504, %v506
        %622 = vadd.xlane.f32.xlu0 %v621
        %v623 = vpop.xlane.xlu0 %622
        %v624 = vadd.f32 %v510, %v512
        %625 = vadd.xlane.f32.xlu0 %v624
        %v626 = vpop.xlane.xlu0 %625
        %v627 = vadd.f32 %v514, %v516
        %628 = vadd.xlane.f32.xlu0 %v627
        %v629 = vpop.xlane.xlu0 %628
        %v630 = vadd.f32 %v520, %v522
        %631 = vadd.xlane.f32.xlu0 %v630
        %v632 = vpop.xlane.xlu0 %631
        %v633 = vadd.f32 %v524, %v526
        %634 = vadd.xlane.f32.xlu0 %v633
        %v635 = vpop.xlane.xlu0 %634
        %v636 = vadd.f32 %v530, %v532
        %637 = vadd.xlane.f32.xlu0 %v636
        %v638 = vpop.xlane.xlu0 %637
        %v639 = vadd.f32 %v534, %v536
        %640 = vadd.xlane.f32.xlu0 %v639
        %v641 = vpop.xlane.xlu0 %640
        %v642 = vadd.f32 %v540, %v542
        %643 = vadd.xlane.f32.xlu0 %v642
        %v644 = vpop.xlane.xlu0 %643
        %v645 = vadd.f32 %v544, %v546
        %646 = vadd.xlane.f32.xlu0 %v645
        %v647 = vpop.xlane.xlu0 %646
        %v648 = vadd.f32 %v550, %v552
        %649 = vadd.xlane.f32.xlu0 %v648
        %v650 = vpop.xlane.xlu0 %649
        %v651 = vadd.f32 %v554, %v556
        %652 = vadd.xlane.f32.xlu0 %v651
        %v653 = vpop.xlane.xlu0 %652
        %v654 = vmul.f32 %v400, %v400
        %v655 = vmul.f32 %v402, %v402
        %v656 = vmul.f32 %v404, %v404
        %v657 = vmul.f32 %v406, %v406
        %v658 = vmul.f32 %v410, %v410
        %v659 = vmul.f32 %v412, %v412
        %v660 = vmul.f32 %v414, %v414
        %v661 = vmul.f32 %v416, %v416
        %v662 = vmul.f32 %v420, %v420
        %v663 = vmul.f32 %v422, %v422
        %v664 = vmul.f32 %v424, %v424
        %v665 = vmul.f32 %v426, %v426
        %v666 = vmul.f32 %v430, %v430
        %v667 = vmul.f32 %v432, %v432
        %v668 = vmul.f32 %v434, %v434
        %v669 = vmul.f32 %v436, %v436
        %v670 = vmul.f32 %v440, %v440
        %v671 = vmul.f32 %v442, %v442
        %v672 = vmul.f32 %v444, %v444
        %v673 = vmul.f32 %v446, %v446
        %v674 = vmul.f32 %v450, %v450
        %v675 = vmul.f32 %v452, %v452
        %v676 = vmul.f32 %v454, %v454
        %v677 = vmul.f32 %v456, %v456
        %v678 = vmul.f32 %v460, %v460
        %v679 = vmul.f32 %v462, %v462
        %v680 = vmul.f32 %v464, %v464
        %v681 = vmul.f32 %v466, %v466
        %v682 = vmul.f32 %v470, %v470
        %v683 = vmul.f32 %v472, %v472
        %v684 = vmul.f32 %v474, %v474
        %v685 = vmul.f32 %v476, %v476
        %v686 = vmul.f32 %v480, %v480
        %v687 = vmul.f32 %v482, %v482
        %v688 = vmul.f32 %v484, %v484
        %v689 = vmul.f32 %v486, %v486
        %v690 = vmul.f32 %v490, %v490
        %v691 = vmul.f32 %v492, %v492
        %v692 = vmul.f32 %v494, %v494
        %v693 = vmul.f32 %v496, %v496
        %v694 = vmul.f32 %v500, %v500
        %v695 = vmul.f32 %v502, %v502
        %v696 = vmul.f32 %v504, %v504
        %v697 = vmul.f32 %v506, %v506
        %v698 = vmul.f32 %v510, %v510
        %v699 = vmul.f32 %v512, %v512
        %v700 = vmul.f32 %v514, %v514
        %v701 = vmul.f32 %v516, %v516
        %v702 = vmul.f32 %v520, %v520
        %v703 = vmul.f32 %v522, %v522
        %v704 = vmul.f32 %v524, %v524
        %v705 = vmul.f32 %v526, %v526
        %v706 = vmul.f32 %v530, %v530
        %v707 = vmul.f32 %v532, %v532
        %v708 = vmul.f32 %v534, %v534
        %v709 = vmul.f32 %v536, %v536
        %v710 = vmul.f32 %v540, %v540
        %v711 = vmul.f32 %v542, %v542
        %v712 = vmul.f32 %v544, %v544
        %v713 = vmul.f32 %v546, %v546
        %v714 = vmul.f32 %v550, %v550
        %v715 = vmul.f32 %v552, %v552
        %v716 = vmul.f32 %v554, %v554
        %v717 = vmul.f32 %v556, %v556
        %v718 = vadd.f32 %v654, %v655
        %719 = vadd.xlane.f32.xlu0 %v718
        %v720 = vpop.xlane.xlu0 %719
        %v721 = vadd.f32 %v656, %v657
        %722 = vadd.xlane.f32.xlu0 %v721
        %v723 = vpop.xlane.xlu0 %722
        %v724 = vadd.f32 %v658, %v659
        %725 = vadd.xlane.f32.xlu0 %v724
        %v726 = vpop.xlane.xlu0 %725
        %v727 = vadd.f32 %v660, %v661
        %728 = vadd.xlane.f32.xlu0 %v727
        %v729 = vpop.xlane.xlu0 %728
        %v730 = vadd.f32 %v662, %v663
        %731 = vadd.xlane.f32.xlu0 %v730
        %v732 = vpop.xlane.xlu0 %731
        %v733 = vadd.f32 %v664, %v665
        %734 = vadd.xlane.f32.xlu0 %v733
        %v735 = vpop.xlane.xlu0 %734
        %v736 = vadd.f32 %v666, %v667
        %737 = vadd.xlane.f32.xlu0 %v736
        %v738 = vpop.xlane.xlu0 %737
        %v739 = vadd.f32 %v668, %v669
        %740 = vadd.xlane.f32.xlu0 %v739
        %v741 = vpop.xlane.xlu0 %740
        %v742 = vadd.f32 %v670, %v671
        %743 = vadd.xlane.f32.xlu0 %v742
        %v744 = vpop.xlane.xlu0 %743
        %v745 = vadd.f32 %v672, %v673
        %746 = vadd.xlane.f32.xlu0 %v745
        %v747 = vpop.xlane.xlu0 %746
        %v748 = vadd.f32 %v674, %v675
        %749 = vadd.xlane.f32.xlu0 %v748
        %v750 = vpop.xlane.xlu0 %749
        %v751 = vadd.f32 %v676, %v677
        %752 = vadd.xlane.f32.xlu0 %v751
        %v753 = vpop.xlane.xlu0 %752
        %v754 = vadd.f32 %v678, %v679
        %755 = vadd.xlane.f32.xlu0 %v754
        %v756 = vpop.xlane.xlu0 %755
        %v757 = vadd.f32 %v680, %v681
        %758 = vadd.xlane.f32.xlu0 %v757
        %v759 = vpop.xlane.xlu0 %758
        %v760 = vadd.f32 %v682, %v683
        %761 = vadd.xlane.f32.xlu0 %v760
        %v762 = vpop.xlane.xlu0 %761
        %v763 = vadd.f32 %v684, %v685
        %764 = vadd.xlane.f32.xlu0 %v763
        %v765 = vpop.xlane.xlu0 %764
        %v766 = vadd.f32 %v686, %v687
        %767 = vadd.xlane.f32.xlu0 %v766
        %v768 = vpop.xlane.xlu0 %767
        %v769 = vadd.f32 %v688, %v689
        %770 = vadd.xlane.f32.xlu0 %v769
        %v771 = vpop.xlane.xlu0 %770
        %v772 = vadd.f32 %v690, %v691
        %773 = vadd.xlane.f32.xlu0 %v772
        %v774 = vpop.xlane.xlu0 %773
        %v775 = vadd.f32 %v692, %v693
        %776 = vadd.xlane.f32.xlu0 %v775
        %v777 = vpop.xlane.xlu0 %776
        %v778 = vadd.f32 %v694, %v695
        %779 = vadd.xlane.f32.xlu0 %v778
        %v780 = vpop.xlane.xlu0 %779
        %v781 = vadd.f32 %v696, %v697
        %782 = vadd.xlane.f32.xlu0 %v781
        %v783 = vpop.xlane.xlu0 %782
        %v784 = vadd.f32 %v698, %v699
        %785 = vadd.xlane.f32.xlu0 %v784
        %v786 = vpop.xlane.xlu0 %785
        %v787 = vadd.f32 %v700, %v701
        %788 = vadd.xlane.f32.xlu0 %v787
        %v789 = vpop.xlane.xlu0 %788
        %v790 = vadd.f32 %v702, %v703
        %791 = vadd.xlane.f32.xlu0 %v790
        %v792 = vpop.xlane.xlu0 %791
        %v793 = vadd.f32 %v704, %v705
        %794 = vadd.xlane.f32.xlu0 %v793
        %v795 = vpop.xlane.xlu0 %794
        %v796 = vadd.f32 %v706, %v707
        %797 = vadd.xlane.f32.xlu0 %v796
        %v798 = vpop.xlane.xlu0 %797
        %v799 = vadd.f32 %v708, %v709
        %800 = vadd.xlane.f32.xlu0 %v799
        %v801 = vpop.xlane.xlu0 %800
        %v802 = vadd.f32 %v710, %v711
        %803 = vadd.xlane.f32.xlu0 %v802
        %v804 = vpop.xlane.xlu0 %803
        %v805 = vadd.f32 %v712, %v713
        %806 = vadd.xlane.f32.xlu0 %v805
        %v807 = vpop.xlane.xlu0 %806
        %v808 = vadd.f32 %v714, %v715
        %809 = vadd.xlane.f32.xlu0 %v808
        %v810 = vpop.xlane.xlu0 %809
        %v811 = vadd.f32 %v716, %v717
        %812 = vadd.xlane.f32.xlu0 %v811
        %v813 = vpop.xlane.xlu0 %812
        %v814 = vmul.f32 %v560, 0.00390625
        %v815 = vmul.f32 %v563, 0.00390625
        %v816 = vmul.f32 %v566, 0.00390625
        %v817 = vmul.f32 %v569, 0.00390625
        %v818 = vmul.f32 %v572, 0.00390625
        %v819 = vmul.f32 %v575, 0.00390625
        %v820 = vmul.f32 %v578, 0.00390625
        %v821 = vmul.f32 %v581, 0.00390625
        %v822 = vmul.f32 %v584, 0.00390625
        %v823 = vmul.f32 %v587, 0.00390625
        %v824 = vmul.f32 %v590, 0.00390625
        %v825 = vmul.f32 %v593, 0.00390625
        %v826 = vmul.f32 %v596, 0.00390625
        %v827 = vmul.f32 %v599, 0.00390625
        %v828 = vmul.f32 %v602, 0.00390625
        %v829 = vmul.f32 %v605, 0.00390625
        %v830 = vmul.f32 %v608, 0.00390625
        %v831 = vmul.f32 %v611, 0.00390625
        %v832 = vmul.f32 %v614, 0.00390625
        %v833 = vmul.f32 %v617, 0.00390625
        %v834 = vmul.f32 %v620, 0.00390625
        %v835 = vmul.f32 %v623, 0.00390625
        %v836 = vmul.f32 %v626, 0.00390625
        %v837 = vmul.f32 %v629, 0.00390625
        %v838 = vmul.f32 %v632, 0.00390625
        %v839 = vmul.f32 %v635, 0.00390625
        %v840 = vmul.f32 %v638, 0.00390625
        %v841 = vmul.f32 %v641, 0.00390625
        %v842 = vmul.f32 %v644, 0.00390625
        %v843 = vmul.f32 %v647, 0.00390625
        %v844 = vmul.f32 %v650, 0.00390625
        %v845 = vmul.f32 %v653, 0.00390625
        %v846 = vmul.f32 %v720, 0.00390625
        %v847 = vmul.f32 %v723, 0.00390625
        %v848 = vmul.f32 %v726, 0.00390625
        %v849 = vmul.f32 %v729, 0.00390625
        %v850 = vmul.f32 %v732, 0.00390625
        %v851 = vmul.f32 %v735, 0.00390625
        %v852 = vmul.f32 %v738, 0.00390625
        %v853 = vmul.f32 %v741, 0.00390625
        %v854 = vmul.f32 %v744, 0.00390625
        %v855 = vmul.f32 %v747, 0.00390625
        %v856 = vmul.f32 %v750, 0.00390625
        %v857 = vmul.f32 %v753, 0.00390625
        %v858 = vmul.f32 %v756, 0.00390625
        %v859 = vmul.f32 %v759, 0.00390625
        %v860 = vmul.f32 %v762, 0.00390625
        %v861 = vmul.f32 %v765, 0.00390625
        %v862 = vmul.f32 %v768, 0.00390625
        %v863 = vmul.f32 %v771, 0.00390625
        %v864 = vmul.f32 %v774, 0.00390625
        %v865 = vmul.f32 %v777, 0.00390625
        %v866 = vmul.f32 %v780, 0.00390625
        %v867 = vmul.f32 %v783, 0.00390625
        %v868 = vmul.f32 %v786, 0.00390625
        %v869 = vmul.f32 %v789, 0.00390625
        %v870 = vmul.f32 %v792, 0.00390625
        %v871 = vmul.f32 %v795, 0.00390625
        %v872 = vmul.f32 %v798, 0.00390625
        %v873 = vmul.f32 %v801, 0.00390625
        %v874 = vmul.f32 %v804, 0.00390625
        %v875 = vmul.f32 %v807, 0.00390625
        %v876 = vmul.f32 %v810, 0.00390625
        %v877 = vmul.f32 %v813, 0.00390625
        %v878 = vmul.f32 %v814, %v814
        %v879 = vmul.f32 %v815, %v815
        %v880 = vmul.f32 %v816, %v816
        %v881 = vmul.f32 %v817, %v817
        %v882 = vmul.f32 %v818, %v818
        %v883 = vmul.f32 %v819, %v819
        %v884 = vmul.f32 %v820, %v820
        %v885 = vmul.f32 %v821, %v821
        %v886 = vmul.f32 %v822, %v822
        %v887 = vmul.f32 %v823, %v823
        %v888 = vmul.f32 %v824, %v824
        %v889 = vmul.f32 %v825, %v825
        %v890 = vmul.f32 %v826, %v826
        %v891 = vmul.f32 %v827, %v827
        %v892 = vmul.f32 %v828, %v828
        %v893 = vmul.f32 %v829, %v829
        %v894 = vmul.f32 %v830, %v830
        %v895 = vmul.f32 %v831, %v831
        %v896 = vmul.f32 %v832, %v832
        %v897 = vmul.f32 %v833, %v833
        %v898 = vmul.f32 %v834, %v834
        %v899 = vmul.f32 %v835, %v835
        %v900 = vmul.f32 %v836, %v836
        %v901 = vmul.f32 %v837, %v837
        %v902 = vmul.f32 %v838, %v838
        %v903 = vmul.f32 %v839, %v839
        %v904 = vmul.f32 %v840, %v840
        %v905 = vmul.f32 %v841, %v841
        %v906 = vmul.f32 %v842, %v842
        %v907 = vmul.f32 %v843, %v843
        %v908 = vmul.f32 %v844, %v844
        %v909 = vmul.f32 %v845, %v845
        %v910 = vsub.f32 %v846, %v878
        %v911 = vsub.f32 %v847, %v879
        %v912 = vsub.f32 %v848, %v880
        %v913 = vsub.f32 %v849, %v881
        %v914 = vsub.f32 %v850, %v882
        %v915 = vsub.f32 %v851, %v883
        %v916 = vsub.f32 %v852, %v884
        %v917 = vsub.f32 %v853, %v885
        %v918 = vsub.f32 %v854, %v886
        %v919 = vsub.f32 %v855, %v887
        %v920 = vsub.f32 %v856, %v888
        %v921 = vsub.f32 %v857, %v889
        %v922 = vsub.f32 %v858, %v890
        %v923 = vsub.f32 %v859, %v891
        %v924 = vsub.f32 %v860, %v892
        %v925 = vsub.f32 %v861, %v893
        %v926 = vsub.f32 %v862, %v894
        %v927 = vsub.f32 %v863, %v895
        %v928 = vsub.f32 %v864, %v896
        %v929 = vsub.f32 %v865, %v897
        %v930 = vsub.f32 %v866, %v898
        %v931 = vsub.f32 %v867, %v899
        %v932 = vsub.f32 %v868, %v900
        %v933 = vsub.f32 %v869, %v901
        %v934 = vsub.f32 %v870, %v902
        %v935 = vsub.f32 %v871, %v903
        %v936 = vsub.f32 %v872, %v904
        %v937 = vsub.f32 %v873, %v905
        %v938 = vsub.f32 %v874, %v906
        %v939 = vsub.f32 %v875, %v907
        %v940 = vsub.f32 %v876, %v908
        %v941 = vsub.f32 %v877, %v909
        %v942 = vmax.f32 %v910, 0.0
        %v943 = vmax.f32 %v911, 0.0
        %v944 = vmax.f32 %v912, 0.0
        %v945 = vmax.f32 %v913, 0.0
        %v946 = vmax.f32 %v914, 0.0
        %v947 = vmax.f32 %v915, 0.0
        %v948 = vmax.f32 %v916, 0.0
        %v949 = vmax.f32 %v917, 0.0
        %v950 = vmax.f32 %v918, 0.0
        %v951 = vmax.f32 %v919, 0.0
        %v952 = vmax.f32 %v920, 0.0
        %v953 = vmax.f32 %v921, 0.0
        %v954 = vmax.f32 %v922, 0.0
        %v955 = vmax.f32 %v923, 0.0
        %v956 = vmax.f32 %v924, 0.0
        %v957 = vmax.f32 %v925, 0.0
        %v958 = vmax.f32 %v926, 0.0
        %v959 = vmax.f32 %v927, 0.0
        %v960 = vmax.f32 %v928, 0.0
        %v961 = vmax.f32 %v929, 0.0
        %v962 = vmax.f32 %v930, 0.0
        %v963 = vmax.f32 %v931, 0.0
        %v964 = vmax.f32 %v932, 0.0
        %v965 = vmax.f32 %v933, 0.0
        %v966 = vmax.f32 %v934, 0.0
        %v967 = vmax.f32 %v935, 0.0
        %v968 = vmax.f32 %v936, 0.0
        %v969 = vmax.f32 %v937, 0.0
        %v970 = vmax.f32 %v938, 0.0
        %v971 = vmax.f32 %v939, 0.0
        %v972 = vmax.f32 %v940, 0.0
        %v973 = vmax.f32 %v941, 0.0
        %v974 = vadd.f32 %v942, 1e-05
        %v975 = vadd.f32 %v943, 1e-05
        %v976 = vadd.f32 %v944, 1e-05
        %v977 = vadd.f32 %v945, 1e-05
        %v978 = vadd.f32 %v946, 1e-05
        %v979 = vadd.f32 %v947, 1e-05
        %v980 = vadd.f32 %v948, 1e-05
        %v981 = vadd.f32 %v949, 1e-05
        %v982 = vadd.f32 %v950, 1e-05
        %v983 = vadd.f32 %v951, 1e-05
        %v984 = vadd.f32 %v952, 1e-05
        %v985 = vadd.f32 %v953, 1e-05
        %v986 = vadd.f32 %v954, 1e-05
        %v987 = vadd.f32 %v955, 1e-05
        %v988 = vadd.f32 %v956, 1e-05
        %v989 = vadd.f32 %v957, 1e-05
        %v990 = vadd.f32 %v958, 1e-05
        %v991 = vadd.f32 %v959, 1e-05
        %v992 = vadd.f32 %v960, 1e-05
        %v993 = vadd.f32 %v961, 1e-05
        %v994 = vadd.f32 %v962, 1e-05
        %v995 = vadd.f32 %v963, 1e-05
        %v996 = vadd.f32 %v964, 1e-05
        %v997 = vadd.f32 %v965, 1e-05
        %v998 = vadd.f32 %v966, 1e-05
        %v999 = vadd.f32 %v967, 1e-05
        %v1000 = vadd.f32 %v968, 1e-05
        %v1001 = vadd.f32 %v969, 1e-05
        %v1002 = vadd.f32 %v970, 1e-05
        %v1003 = vadd.f32 %v971, 1e-05
        %v1004 = vadd.f32 %v972, 1e-05
        %v1005 = vadd.f32 %v973, 1e-05
        %v1006 = vrsqrt.pop %v974
        %v1007 = vrsqrt.pop %v975
        %v1008 = vrsqrt.pop %v976
        %v1009 = vrsqrt.pop %v977
        %v1010 = vrsqrt.pop %v978
        %v1011 = vrsqrt.pop %v979
        %v1012 = vrsqrt.pop %v980
        %v1013 = vrsqrt.pop %v981
        %v1014 = vrsqrt.pop %v982
        %v1015 = vrsqrt.pop %v983
        %v1016 = vrsqrt.pop %v984
        %v1017 = vrsqrt.pop %v985
        %v1018 = vrsqrt.pop %v986
        %v1019 = vrsqrt.pop %v987
        %v1020 = vrsqrt.pop %v988
        %v1021 = vrsqrt.pop %v989
        %v1022 = vrsqrt.pop %v990
        %v1023 = vrsqrt.pop %v991
        %v1024 = vrsqrt.pop %v992
        %v1025 = vrsqrt.pop %v993
        %v1026 = vrsqrt.pop %v994
        %v1027 = vrsqrt.pop %v995
        %v1028 = vrsqrt.pop %v996
        %v1029 = vrsqrt.pop %v997
        %v1030 = vrsqrt.pop %v998
        %v1031 = vrsqrt.pop %v999
        %v1032 = vrsqrt.pop %v1000
        %v1033 = vrsqrt.pop %v1001
        %v1034 = vrsqrt.pop %v1002
        %v1035 = vrsqrt.pop %v1003
        %v1036 = vrsqrt.pop %v1004
        %v1037 = vrsqrt.pop %v1005
        %v1038 = vsub.f32 %v400, %v814
        %v1039 = vsub.f32 %v402, %v814
        %v1040 = vsub.f32 %v404, %v815
        %v1041 = vsub.f32 %v406, %v815
        %v1042 = vsub.f32 %v410, %v816
        %v1043 = vsub.f32 %v412, %v816
        %v1044 = vsub.f32 %v414, %v817
        %v1045 = vsub.f32 %v416, %v817
        %v1046 = vsub.f32 %v420, %v818
        %v1047 = vsub.f32 %v422, %v818
        %v1048 = vsub.f32 %v424, %v819
        %v1049 = vsub.f32 %v426, %v819
        %v1050 = vsub.f32 %v430, %v820
        %v1051 = vsub.f32 %v432, %v820
        %v1052 = vsub.f32 %v434, %v821
        %v1053 = vsub.f32 %v436, %v821
        %v1054 = vsub.f32 %v440, %v822
        %v1055 = vsub.f32 %v442, %v822
        %v1056 = vsub.f32 %v444, %v823
        %v1057 = vsub.f32 %v446, %v823
        %v1058 = vsub.f32 %v450, %v824
        %v1059 = vsub.f32 %v452, %v824
        %v1060 = vsub.f32 %v454, %v825
        %v1061 = vsub.f32 %v456, %v825
        %v1062 = vsub.f32 %v460, %v826
        %v1063 = vsub.f32 %v462, %v826
        %v1064 = vsub.f32 %v464, %v827
        %v1065 = vsub.f32 %v466, %v827
        %v1066 = vsub.f32 %v470, %v828
        %v1067 = vsub.f32 %v472, %v828
        %v1068 = vsub.f32 %v474, %v829
        %v1069 = vsub.f32 %v476, %v829
        %v1070 = vsub.f32 %v480, %v830
        %v1071 = vsub.f32 %v482, %v830
        %v1072 = vsub.f32 %v484, %v831
        %v1073 = vsub.f32 %v486, %v831
        %v1074 = vsub.f32 %v490, %v832
        %v1075 = vsub.f32 %v492, %v832
        %v1076 = vsub.f32 %v494, %v833
        %v1077 = vsub.f32 %v496, %v833
        %v1078 = vsub.f32 %v500, %v834
        %v1079 = vsub.f32 %v502, %v834
        %v1080 = vsub.f32 %v504, %v835
        %v1081 = vsub.f32 %v506, %v835
        %v1082 = vsub.f32 %v510, %v836
        %v1083 = vsub.f32 %v512, %v836
        %v1084 = vsub.f32 %v514, %v837
        %v1085 = vsub.f32 %v516, %v837
        %v1086 = vsub.f32 %v520, %v838
        %v1087 = vsub.f32 %v522, %v838
        %v1088 = vsub.f32 %v524, %v839
        %v1089 = vsub.f32 %v526, %v839
        %v1090 = vsub.f32 %v530, %v840
        %v1091 = vsub.f32 %v532, %v840
        %v1092 = vsub.f32 %v534, %v841
        %v1093 = vsub.f32 %v536, %v841
        %v1094 = vsub.f32 %v540, %v842
        %v1095 = vsub.f32 %v542, %v842
        %v1096 = vsub.f32 %v544, %v843
        %v1097 = vsub.f32 %v546, %v843
        %v1098 = vsub.f32 %v550, %v844
        %v1099 = vsub.f32 %v552, %v844
        %v1100 = vsub.f32 %v554, %v845
        %v1101 = vsub.f32 %v556, %v845
        %v1102 = vmul.f32 %v1038, %v1006
        %v1103 = vmul.f32 %v1039, %v1006
        %v1104 = vmul.f32 %v1040, %v1007
        %v1105 = vmul.f32 %v1041, %v1007
        %v1106 = vmul.f32 %v1042, %v1008
        %v1107 = vmul.f32 %v1043, %v1008
        %v1108 = vmul.f32 %v1044, %v1009
        %v1109 = vmul.f32 %v1045, %v1009
        %v1110 = vmul.f32 %v1046, %v1010
        %v1111 = vmul.f32 %v1047, %v1010
        %v1112 = vmul.f32 %v1048, %v1011
        %v1113 = vmul.f32 %v1049, %v1011
        %v1114 = vmul.f32 %v1050, %v1012
        %v1115 = vmul.f32 %v1051, %v1012
        %v1116 = vmul.f32 %v1052, %v1013
        %v1117 = vmul.f32 %v1053, %v1013
        %v1118 = vmul.f32 %v1054, %v1014
        %v1119 = vmul.f32 %v1055, %v1014
        %v1120 = vmul.f32 %v1056, %v1015
        %v1121 = vmul.f32 %v1057, %v1015
        %v1122 = vmul.f32 %v1058, %v1016
        %v1123 = vmul.f32 %v1059, %v1016
        %v1124 = vmul.f32 %v1060, %v1017
        %v1125 = vmul.f32 %v1061, %v1017
        %v1126 = vmul.f32 %v1062, %v1018
        %v1127 = vmul.f32 %v1063, %v1018
        %v1128 = vmul.f32 %v1064, %v1019
        %v1129 = vmul.f32 %v1065, %v1019
        %v1130 = vmul.f32 %v1066, %v1020
        %v1131 = vmul.f32 %v1067, %v1020
        %v1132 = vmul.f32 %v1068, %v1021
        %v1133 = vmul.f32 %v1069, %v1021
        %v1134 = vmul.f32 %v1070, %v1022
        %v1135 = vmul.f32 %v1071, %v1022
        %v1136 = vmul.f32 %v1072, %v1023
        %v1137 = vmul.f32 %v1073, %v1023
        %v1138 = vmul.f32 %v1074, %v1024
        %v1139 = vmul.f32 %v1075, %v1024
        %v1140 = vmul.f32 %v1076, %v1025
        %v1141 = vmul.f32 %v1077, %v1025
        %v1142 = vmul.f32 %v1078, %v1026
        %v1143 = vmul.f32 %v1079, %v1026
        %v1144 = vmul.f32 %v1080, %v1027
        %v1145 = vmul.f32 %v1081, %v1027
        %v1146 = vmul.f32 %v1082, %v1028
        %v1147 = vmul.f32 %v1083, %v1028
        %v1148 = vmul.f32 %v1084, %v1029
        %v1149 = vmul.f32 %v1085, %v1029
        %v1150 = vmul.f32 %v1086, %v1030
        %v1151 = vmul.f32 %v1087, %v1030
        %v1152 = vmul.f32 %v1088, %v1031
        %v1153 = vmul.f32 %v1089, %v1031
        %v1154 = vmul.f32 %v1090, %v1032
        %v1155 = vmul.f32 %v1091, %v1032
        %v1156 = vmul.f32 %v1092, %v1033
        %v1157 = vmul.f32 %v1093, %v1033
        %v1158 = vmul.f32 %v1094, %v1034
        %v1159 = vmul.f32 %v1095, %v1034
        %v1160 = vmul.f32 %v1096, %v1035
        %v1161 = vmul.f32 %v1097, %v1035
        %v1162 = vmul.f32 %v1098, %v1036
        %v1163 = vmul.f32 %v1099, %v1036
        %v1164 = vmul.f32 %v1100, %v1037
        %v1165 = vmul.f32 %v1101, %v1037
        %v1166 = vmax.f32 %v1102, 0.0
        %v1167 = vmax.f32 %v1103, 0.0
        %v1168 = vmax.f32 %v1104, 0.0
        %v1169 = vmax.f32 %v1105, 0.0
        %v1170 = vmax.f32 %v1106, 0.0
        %v1171 = vmax.f32 %v1107, 0.0
        %v1172 = vmax.f32 %v1108, 0.0
        %v1173 = vmax.f32 %v1109, 0.0
        %v1174 = vmax.f32 %v1110, 0.0
        %v1175 = vmax.f32 %v1111, 0.0
        %v1176 = vmax.f32 %v1112, 0.0
        %v1177 = vmax.f32 %v1113, 0.0
        %v1178 = vmax.f32 %v1114, 0.0
        %v1179 = vmax.f32 %v1115, 0.0
        %v1180 = vmax.f32 %v1116, 0.0
        %v1181 = vmax.f32 %v1117, 0.0
        %v1182 = vmax.f32 %v1118, 0.0
        %v1183 = vmax.f32 %v1119, 0.0
        %v1184 = vmax.f32 %v1120, 0.0
        %v1185 = vmax.f32 %v1121, 0.0
        %v1186 = vmax.f32 %v1122, 0.0
        %v1187 = vmax.f32 %v1123, 0.0
        %v1188 = vmax.f32 %v1124, 0.0
        %v1189 = vmax.f32 %v1125, 0.0
        %v1190 = vmax.f32 %v1126, 0.0
        %v1191 = vmax.f32 %v1127, 0.0
        %v1192 = vmax.f32 %v1128, 0.0
        %v1193 = vmax.f32 %v1129, 0.0
        %v1194 = vmax.f32 %v1130, 0.0
        %v1195 = vmax.f32 %v1131, 0.0
        %v1196 = vmax.f32 %v1132, 0.0
        %v1197 = vmax.f32 %v1133, 0.0
        %v1198 = vmax.f32 %v1134, 0.0
        %v1199 = vmax.f32 %v1135, 0.0
        %v1200 = vmax.f32 %v1136, 0.0
        %v1201 = vmax.f32 %v1137, 0.0
        %v1202 = vmax.f32 %v1138, 0.0
        %v1203 = vmax.f32 %v1139, 0.0
        %v1204 = vmax.f32 %v1140, 0.0
        %v1205 = vmax.f32 %v1141, 0.0
        %v1206 = vmax.f32 %v1142, 0.0
        %v1207 = vmax.f32 %v1143, 0.0
        %v1208 = vmax.f32 %v1144, 0.0
        %v1209 = vmax.f32 %v1145, 0.0
        %v1210 = vmax.f32 %v1146, 0.0
        %v1211 = vmax.f32 %v1147, 0.0
        %v1212 = vmax.f32 %v1148, 0.0
        %v1213 = vmax.f32 %v1149, 0.0
        %v1214 = vmax.f32 %v1150, 0.0
        %v1215 = vmax.f32 %v1151, 0.0
        %v1216 = vmax.f32 %v1152, 0.0
        %v1217 = vmax.f32 %v1153, 0.0
        %v1218 = vmax.f32 %v1154, 0.0
        %v1219 = vmax.f32 %v1155, 0.0
        %v1220 = vmax.f32 %v1156, 0.0
        %v1221 = vmax.f32 %v1157, 0.0
        %v1222 = vmax.f32 %v1158, 0.0
        %v1223 = vmax.f32 %v1159, 0.0
        %v1224 = vmax.f32 %v1160, 0.0
        %v1225 = vmax.f32 %v1161, 0.0
        %v1226 = vmax.f32 %v1162, 0.0
        %v1227 = vmax.f32 %v1163, 0.0
        %v1228 = vmax.f32 %v1164, 0.0
        %v1229 = vmax.f32 %v1165, 0.0
        %1230 = vst [vmem:[%s166] sm:$0xff] %v1166
        %1231 = vst [vmem:[%s166 + $0x8] sm:$0xff] %v1167
        %1232 = vst [vmem:[%s166 + $0x10] sm:$0xff] %v1168
        %1233 = vst [vmem:[%s166 + $0x18] sm:$0xff] %v1169
        %1234 = vst [vmem:[%s166 + $0x20] sm:$0xff] %v1170
        %1235 = vst [vmem:[%s166 + $0x28] sm:$0xff] %v1171
        %1236 = vst [vmem:[%s166 + $0x30] sm:$0xff] %v1172
        %1237 = vst [vmem:[%s166 + $0x38] sm:$0xff] %v1173
        %1238 = vst [vmem:[%s166 + $0x40] sm:$0xff] %v1174
        %1239 = vst [vmem:[%s166 + $0x48] sm:$0xff] %v1175
        %1240 = vst [vmem:[%s166 + $0x50] sm:$0xff] %v1176
        %1241 = vst [vmem:[%s166 + $0x58] sm:$0xff] %v1177
        %1242 = vst [vmem:[%s166 + $0x60] sm:$0xff] %v1178
        %1243 = vst [vmem:[%s166 + $0x68] sm:$0xff] %v1179
        %1244 = vst [vmem:[%s166 + $0x70] sm:$0xff] %v1180
        %1245 = vst [vmem:[%s166 + $0x78] sm:$0xff] %v1181
        %1246 = vst [vmem:[%s166 + $0x80] sm:$0xff] %v1182
        %1247 = vst [vmem:[%s166 + $0x88] sm:$0xff] %v1183
        %1248 = vst [vmem:[%s166 + $0x90] sm:$0xff] %v1184
        %1249 = vst [vmem:[%s166 + $0x98] sm:$0xff] %v1185
        %1250 = vst [vmem:[%s166 + $0xa0] sm:$0xff] %v1186
        %1251 = vst [vmem:[%s166 + $0xa8] sm:$0xff] %v1187
        %1252 = vst [vmem:[%s166 + $0xb0] sm:$0xff] %v1188
        %1253 = vst [vmem:[%s166 + $0xb8] sm:$0xff] %v1189
        %1254 = vst [vmem:[%s166 + $0xc0] sm:$0xff] %v1190
        %1255 = vst [vmem:[%s166 + $0xc8] sm:$0xff] %v1191
        %1256 = vst [vmem:[%s166 + $0xd0] sm:$0xff] %v1192
        %1257 = vst [vmem:[%s166 + $0xd8] sm:$0xff] %v1193
        %1258 = vst [vmem:[%s166 + $0xe0] sm:$0xff] %v1194
        %1259 = vst [vmem:[%s166 + $0xe8] sm:$0xff] %v1195
        %1260 = vst [vmem:[%s166 + $0xf0] sm:$0xff] %v1196
        %1261 = vst [vmem:[%s166 + $0xf8] sm:$0xff] %v1197
        %1262 = vst [vmem:[%s166 + $0x100] sm:$0xff] %v1198
        %1263 = vst [vmem:[%s166 + $0x108] sm:$0xff] %v1199
        %1264 = vst [vmem:[%s166 + $0x110] sm:$0xff] %v1200
        %1265 = vst [vmem:[%s166 + $0x118] sm:$0xff] %v1201
        %1266 = vst [vmem:[%s166 + $0x120] sm:$0xff] %v1202
        %1267 = vst [vmem:[%s166 + $0x128] sm:$0xff] %v1203
        %1268 = vst [vmem:[%s166 + $0x130] sm:$0xff] %v1204
        %1269 = vst [vmem:[%s166 + $0x138] sm:$0xff] %v1205
        %1270 = vst [vmem:[%s166 + $0x140] sm:$0xff] %v1206
        %1271 = vst [vmem:[%s166 + $0x148] sm:$0xff] %v1207
        %1272 = vst [vmem:[%s166 + $0x150] sm:$0xff] %v1208
        %1273 = vst [vmem:[%s166 + $0x158] sm:$0xff] %v1209
        %1274 = vst [vmem:[%s166 + $0x160] sm:$0xff] %v1210
        %1275 = vst [vmem:[%s166 + $0x168] sm:$0xff] %v1211
        %1276 = vst [vmem:[%s166 + $0x170] sm:$0xff] %v1212
        %1277 = vst [vmem:[%s166 + $0x178] sm:$0xff] %v1213
        %1278 = vst [vmem:[%s166 + $0x180] sm:$0xff] %v1214
        %1279 = vst [vmem:[%s166 + $0x188] sm:$0xff] %v1215
        %1280 = vst [vmem:[%s166 + $0x190] sm:$0xff] %v1216
        %1281 = vst [vmem:[%s166 + $0x198] sm:$0xff] %v1217
        %1282 = vst [vmem:[%s166 + $0x1a0] sm:$0xff] %v1218
        %1283 = vst [vmem:[%s166 + $0x1a8] sm:$0xff] %v1219
        %1284 = vst [vmem:[%s166 + $0x1b0] sm:$0xff] %v1220
        %1285 = vst [vmem:[%s166 + $0x1b8] sm:$0xff] %v1221
        %1286 = vst [vmem:[%s166 + $0x1c0] sm:$0xff] %v1222
        %1287 = vst [vmem:[%s166 + $0x1c8] sm:$0xff] %v1223
        %1288 = vst [vmem:[%s166 + $0x1d0] sm:$0xff] %v1224
        %1289 = vst [vmem:[%s166 + $0x1d8] sm:$0xff] %v1225
        %1290 = vst [vmem:[%s166 + $0x1e0] sm:$0xff] %v1226
        %1291 = vst [vmem:[%s166 + $0x1e8] sm:$0xff] %v1227
        %1292 = vst [vmem:[%s166 + $0x1f0] sm:$0xff] %v1228
        %1293 = vst [vmem:[%s166 + $0x1f8] sm:$0xff] %v1229
        %s1294 = sand.u32 %s90, 1
        %s1295 = scalar_lea.sflag [#allocation3], %s1294
        %s1296 = sand.u32 %s90, 1
        %s1297 = smul.addr %s1296, 512
        %s1298 = scalar_lea.vmem [#allocation2], %s1297
        // Predicated region
        $region29: #{tpu_custom_call.1} parent=27 // pred_check
          %p1299 = pneg %p100
        $region30: #{tpu_custom_call.1} parent=27 // pred_check_branch
          %1301 = sbr.rel (%p1299) target = $region32
        $region31: #{tpu_custom_call.1} parent=27 // pred_region
          %s1302 = smul.u32 32, %s21
          %s1304 = ssub.s32 8192, 8192
          %1305 = vsyncadd %s1295, %s1304
          %s1306 = smul.addr %s1302, 2
          %s1307 = smul.addr %s20, 64
          %s1308 = sadd.s32 %s1306, %s1307
          %s1309 = smul.addr %s1308, 128
          %s1310 = scalar_lea.hbm %s2, %s1309
          %s1311 = sshll.u32 %s1298, 4
          %s1312 = int_to_ptr.vmem [resolvable:$true] %s1311
          %1317 = dma.vmem_to_hbm [thread:$0]  %s1312, 8192, %s1310, %s1295, 256, 256, 16
        $region32: #{tpu_custom_call.1} parent=27 // pred_fallthru
          _
      $region28: #{tpu_custom_call.1} parent=5 // pred_fallthru
        _
      %p1318 = scmp.le.s32.totalorder 2, %s11
      // Predicated region
      $region33: #{tpu_custom_call.1} parent=5 // pred_check
        %p1319 = pneg %p1318
      $region34: #{tpu_custom_call.1} parent=5 // pred_check_branch
        %1321 = sbr.rel (%p1319) target = $region36
      $region35: #{tpu_custom_call.1} parent=5 // pred_region
        %s1322 = ssub.s32 %s11, 2
        // Predicated region
        $region37: #{tpu_custom_call.1} parent=35 // pred_check
          %p1323 = pneg %p106
        $region38: #{tpu_custom_call.1} parent=35 // pred_check_branch
          %1325 = sbr.rel (%p1323) target = $region40
        $region39: #{tpu_custom_call.1} parent=35 // pred_region
          %s1326 = sand.u32 %s91, 1
          %s1327 = scalar_lea.sflag [#allocation3], %s1326
          %s1328 = sand.u32 %s91, 1
          %s1329 = smul.addr %s1328, 512
          %s1330 = scalar_lea.vmem [#allocation2], %s1329
          %1331 = dma.done %s1327, 8192
        $region40: #{tpu_custom_call.1} parent=35 // pred_fallthru
          _
      $region36: #{tpu_custom_call.1} parent=5 // pred_fallthru
        _
    $region6: #{tpu_custom_call.1} parent=1 // loop_footer
      %s15 = sadd.s32 1, %s11
    $region7: #{tpu_custom_call.1} parent=1 // loop_footer_branch
      %10 = sbr.rel target = $region3
    $region8: #{tpu_custom_call.1} parent=1 // loop_exit
      _
    %1332 = vsyncpa [#allocation3], 1
    %s1333 = scalar_lea.sflag [#allocation3], 1
    %1334 = vsyncpa %s1333, 1

</llo_original>
